<compile_context>
chip_gen: v6e
topology: v6e:2x2x1
jax: 0.10.0
libtpu: 0.0.40
codegen_flags: <defaults>
</compile_context>

<pallas_src>
import functools

import jax
import jax.numpy as jnp
from jax.experimental import pallas as pl
from jax.experimental.pallas import tpu as pltpu

THRESH = 0.5
EPS = 1e-5


def _round_up(x, m):
    return (x + m - 1) // m * m


def _pick_block(total, target, align):
    """Largest `align`-multiple divisor of `total` <= target (else `total`)."""
    if total <= target:
        return total
    d = (target // align) * align
    while d >= align:
        if total % d == 0:
            return d
        d -= align
    return total


def _choose_tiling(total, target, align):
    """Return (padded_total, block) with block dividing padded_total.

    - total <= target: full-extent block (always legal, no padding / copy).
    - total >  target with an aligned divisor: use it, no padding.
    - awkward extents (no aligned divisor <= target): pad to a `target`
      multiple so the block never exceeds the VMEM budget.
    """
    if total <= target:
        return total, total
    b = _pick_block(total, target, align)
    if b != total:
        return total, b
    return _round_up(total, target), target


def _tpu_generation(default=5):
    try:
        kind = jax.devices()[0].device_kind.lower()
    except Exception:
        return default
    for g in (7, 6, 5):
        if f"v{g}" in kind or f"tpu{g}" in kind:
            return g
    return default


# ---------------- fused (resident) fast path ----------------
def _fused_bn_kernel(x_ref, gamma_ref, beta_ref, o_ref, *, inv_n, eps):
    x = x_ref[...].astype(jnp.float32)                 # (TN, C, HW)
    s = jnp.sum(x, axis=0, keepdims=True)              # (1, C, HW)
    q = jnp.sum(x * x, axis=0, keepdims=True)
    s = jnp.sum(s, axis=2, keepdims=True)              # (1, C, 1)
    q = jnp.sum(q, axis=2, keepdims=True)
    mean = s * inv_n
    var = jnp.maximum(q * inv_n - mean * mean, 0.0)    # biased variance
    scale = gamma_ref[...] * jax.lax.rsqrt(var + eps)
    shift = beta_ref[...] - mean * scale
    o_ref[...] = (x * scale + shift).astype(o_ref.dtype)


# ---------------- streaming two-pass path ----------------
def _stats_kernel(x_ref, stats_ref):
    # Grid = (L tiles, TN tiles); TN (the reduction) is the innermost axis.
    i = pl.program_id(1)

    @pl.when(i == 0)
    def _init():
        stats_ref[...] = jnp.zeros_like(stats_ref)

    x = x_ref[...].astype(jnp.float32)
    s = jnp.sum(x, axis=0, keepdims=True)
    q = jnp.sum(x * x, axis=0, keepdims=True)
    stats_ref[...] += jnp.concatenate([s, q], axis=0)   # (2, block_l), one store


def _norm_kernel(x_ref, scale_ref, shift_ref, o_ref):
    # One FMA per element; (1, block_l) scale/shift broadcast across sublanes.
    x = x_ref[...].astype(jnp.float32)
    o_ref[...] = (x * scale_ref[...] + shift_ref[...]).astype(o_ref.dtype)


def batch_norm_2d1_forward(x, gamma, beta, eps=EPS, force_streaming=False):
    """x: (T, N, C, H, W). Training-mode per-channel BN. Returns same shape."""
    T, N, C, H, W = x.shape
    TN, HW = T * N, H * W
    L = C * HW
    n = TN * HW                                   # elements per channel

    gen = _tpu_generation()
    if gen >= 7:        # v7x: 64 MiB physical VMEM / TC, 2 TCs, ~3.2 TB/s
        stats_tn_t, norm_tn_t, lane_t, vmem_limit = 512, 512, 2048, 48 << 20
    elif gen == 6:      # v6e: 128 MiB physical VMEM
        stats_tn_t, norm_tn_t, lane_t, vmem_limit = 1024, 256, 2048, 64 << 20
    else:               # v5e and older: keep 2 MiB tiles, modest VMEM cap
        stats_tn_t, norm_tn_t, lane_t, vmem_limit = 256, 256, 2048, 32 << 20

    # ---- small-input resident fast path: one kernel, one HBM read of x ----
    fused_f32_bytes = TN * _round_up(C, 8) * _round_up(HW, 128) * 4
    if not force_streaming and 5 * fused_f32_bytes <= vmem_limit:
        x3d = x.reshape(TN, C, HW)
        gamma3 = gamma.astype(jnp.float32).reshape(1, C, 1)
        beta3 = beta.astype(jnp.float32).reshape(1, C, 1)
        out3d = pl.pallas_call(
            functools.partial(_fused_bn_kernel,
                              inv_n=1.0 / float(n), eps=float(eps)),
            out_shape=jax.ShapeDtypeStruct((TN, C, HW), x.dtype),
            in_specs=[pl.BlockSpec(memory_space=pltpu.MemorySpace.VMEM)] * 3,
            out_specs=pl.BlockSpec(memory_space=pltpu.MemorySpace.VMEM),
            compiler_params=pltpu.CompilerParams(vmem_limit_bytes=vmem_limit),
        )(x3d, gamma3, beta3)
        return out3d.reshape(T, N, C, H, W)

    # ---- streaming path: (TN, L) slab, shape-robust tiling ----
    TN_pad, blk_tn_stats = _choose_tiling(TN, stats_tn_t, 8)
    L_pad, blk_l = _choose_tiling(L, lane_t, 128)

    # v7x: both TensorCores only stream pass 1 if the 'parallel' (lane) axis
    # has >= 2 blocks; split the lane tile when it would otherwise be 1 block.
    if gen >= 7 and L_pad // blk_l == 1 and L_pad >= 256:
        half = max(128, (L_pad // 2) // 128 * 128)
        cand = _pick_block(L_pad, half, 128)
        if cand < L_pad:
            blk_l = cand

    blk_tn_norm = (blk_tn_stats if blk_tn_stats <= norm_tn_t
                   else _pick_block(TN_pad, norm_tn_t, 8))

    x2d = x.reshape(TN, L)                        # contiguous -> free reshape
    if TN_pad != TN or L_pad != L:
        # Zero padding: contributes 0 to the sums; count uses the true TN*HW.
        x2d = jnp.pad(x2d, ((0, TN_pad - TN), (0, L_pad - L)))

    n_l = L_pad // blk_l
    n_tn_s = TN_pad // blk_tn_stats
    n_tn_n = TN_pad // blk_tn_norm
    isz = x2d.dtype.itemsize

    # pass 1: merged per-lane (sum, sum-of-squares) reduced over TN
    stats = pl.pallas_call(
        _stats_kernel,
        out_shape=jax.ShapeDtypeStruct((2, L_pad), jnp.float32),
        grid_spec=pltpu.PrefetchScalarGridSpec(
            num_scalar_prefetch=0,
            grid=(n_l, n_tn_s),
            in_specs=[pl.BlockSpec((blk_tn_stats, blk_l), lambda j, i: (i, j))],
            out_specs=pl.BlockSpec((2, blk_l), lambda j, i: (0, j))),
        compiler_params=pltpu.CompilerParams(
            dimension_semantics=("parallel", "arbitrary"),
            vmem_limit_bytes=vmem_limit),
        cost_estimate=pl.CostEstimate(
            flops=3 * TN_pad * L_pad, transcendentals=0,
            bytes_accessed=TN_pad * L_pad * isz + 2 * L_pad * 4),
    )(x2d)

    # tiny O(C*HW) epilogue in plain JAX: fold HW, mean/var, scale/shift.
    nf = jnp.float32(n)
    sum_c = jnp.sum(stats[0, :L].reshape(C, HW), axis=1)
    ssq_c = jnp.sum(stats[1, :L].reshape(C, HW), axis=1)
    mean_c = sum_c / nf
    var_c = jnp.maximum(ssq_c / nf - mean_c * mean_c, 0.0)   # biased variance
    scale_c = gamma.astype(jnp.float32) * jax.lax.rsqrt(var_c + eps)
    shift_c = beta.astype(jnp.float32) - mean_c * scale_c
    scale_l = jnp.repeat(scale_c, HW)
    shift_l = jnp.repeat(shift_c, HW)
    if L_pad != L:
        scale_l = jnp.pad(scale_l, (0, L_pad - L))
        shift_l = jnp.pad(shift_l, (0, L_pad - L))
    scale_row = scale_l.reshape(1, L_pad)
    shift_row = shift_l.reshape(1, L_pad)

    # pass 2: y = x * scale + shift, streamed, lane-dense, fully 'parallel'
    out2d = pl.pallas_call(
        _norm_kernel,
        out_shape=jax.ShapeDtypeStruct((TN_pad, L_pad), x.dtype),
        grid_spec=pltpu.PrefetchScalarGridSpec(
            num_scalar_prefetch=0,
            grid=(n_l, n_tn_n),
            in_specs=[pl.BlockSpec((blk_tn_norm, blk_l), lambda j, i: (i, j)),
                      pl.BlockSpec((1, blk_l), lambda j, i: (0, j)),
                      pl.BlockSpec((1, blk_l), lambda j, i: (0, j))],
            out_specs=pl.BlockSpec((blk_tn_norm, blk_l), lambda j, i: (i, j))),
        compiler_params=pltpu.CompilerParams(
            dimension_semantics=("parallel", "parallel"),
            vmem_limit_bytes=vmem_limit),
        cost_estimate=pl.CostEstimate(
            flops=2 * TN_pad * L_pad, transcendentals=0,
            bytes_accessed=2 * TN_pad * L_pad * isz + 2 * L_pad * 4),
    )(x2d, scale_row, shift_row)

    if TN_pad != TN or L_pad != L:
        out2d = out2d[:TN, :L]
    return out2d.reshape(T, N, C, H, W)


if __name__ == "__main__":
    # Small shapes consistent with the module: (T, N, C, H, W)
    T, N, C, H, W = 4, 2, 4, 8, 8

    key = jax.random.PRNGKey(0)
    x = jax.random.normal(key, (T, N, C, H, W), dtype=jnp.float32)

    # Deterministic params per BatchNorm3d2.reset_parameters:
    #   weight = 0.2 * thresh = 0.1, bias = 0
    gamma = jnp.full((C,), 0.2 * THRESH, dtype=jnp.float32)
    beta = jnp.zeros((C,), dtype=jnp.float32)
    # TODO(synk): running_mean/running_var tracking (momentum=0.1) is stateful
    # bookkeeping only; it does not affect the training-mode forward output.

    # Pure-JAX reference of the same semantics (sanity check).
    mean = jnp.mean(x, axis=(0, 1, 3, 4), keepdims=True)
    var = jnp.mean((x - mean) ** 2, axis=(0, 1, 3, 4), keepdims=True)
    ref = (gamma.reshape(1, 1, C, 1, 1) * (x - mean) * jax.lax.rsqrt(var + EPS)
           + beta.reshape(1, 1, C, 1, 1))

    # Fused resident fast path (default dispatch for this small shape).
    y_fused = jax.block_until_ready(batch_norm_2d1_forward(x, gamma, beta))
    assert jnp.allclose(y_fused, ref, atol=1e-4, rtol=1e-4), "fused path mismatch"

    # Streaming two-pass path (the large-input code path), forced for coverage.
    y_stream = jax.block_until_ready(
        batch_norm_2d1_forward(x, gamma, beta, force_streaming=True))
    assert jnp.allclose(y_stream, ref, atol=1e-4, rtol=1e-4), "streaming path mismatch"

    print("KERNEL_OK")
</pallas_src>

<mosaic_0001>
module attributes {stable_mosaic.version = 11 : i64} {
  func.func @_fused_bn_kernel(%arg0: memref<8x4x64xf32, #tpu.memory_space<vmem>>, %arg1: memref<1x4x1xf32, #tpu.memory_space<vmem>>, %arg2: memref<1x4x1xf32, #tpu.memory_space<vmem>>, %arg3: memref<8x4x64xf32, #tpu.memory_space<vmem>>) attributes {dimension_semantics = [], scalar_prefetch = 0 : i64, scratch_operands = 0 : i64, tpu.core_type = #tpu.core_type<tc>} {
    %c0 = arith.constant 0 : index
    %c0_0 = arith.constant 0 : index
    %c0_1 = arith.constant 0 : index
    %0 = vector.load %arg0[%c0, %c0_0, %c0_1] : memref<8x4x64xf32, #tpu.memory_space<vmem>>, vector<8x4x64xf32>
    %cst = arith.constant dense<0.000000e+00> : vector<4x64xf32>
    %1 = vector.multi_reduction <add>, %0, %cst [0] : vector<8x4x64xf32> to vector<4x64xf32>
    %2 = vector.shape_cast %1 : vector<4x64xf32> to vector<1x4x64xf32>
    %3 = arith.mulf %0, %0 : vector<8x4x64xf32>
    %cst_2 = arith.constant dense<0.000000e+00> : vector<4x64xf32>
    %4 = vector.multi_reduction <add>, %3, %cst_2 [0] : vector<8x4x64xf32> to vector<4x64xf32>
    %5 = vector.shape_cast %4 : vector<4x64xf32> to vector<1x4x64xf32>
    %cst_3 = arith.constant dense<0.000000e+00> : vector<1x4xf32>
    %6 = vector.multi_reduction <add>, %2, %cst_3 [2] : vector<1x4x64xf32> to vector<1x4xf32>
    %7 = vector.shape_cast %6 : vector<1x4xf32> to vector<1x4x1xf32>
    %cst_4 = arith.constant dense<0.000000e+00> : vector<1x4xf32>
    %8 = vector.multi_reduction <add>, %5, %cst_4 [2] : vector<1x4x64xf32> to vector<1x4xf32>
    %9 = vector.shape_cast %8 : vector<1x4xf32> to vector<1x4x1xf32>
    %cst_5 = arith.constant 0.001953125 : f32
    %10 = vector.broadcast %cst_5 : f32 to vector<1x4x1xf32>
    %11 = arith.mulf %7, %10 : vector<1x4x1xf32>
    %cst_6 = arith.constant 0.001953125 : f32
    %12 = vector.broadcast %cst_6 : f32 to vector<1x4x1xf32>
    %13 = arith.mulf %9, %12 : vector<1x4x1xf32>
    %14 = arith.mulf %11, %11 : vector<1x4x1xf32>
    %15 = arith.subf %13, %14 : vector<1x4x1xf32>
    %cst_7 = arith.constant 0.000000e+00 : f32
    %16 = vector.broadcast %cst_7 : f32 to vector<1x4x1xf32>
    %17 = arith.maximumf %15, %16 : vector<1x4x1xf32>
    %c0_8 = arith.constant 0 : index
    %c0_9 = arith.constant 0 : index
    %c0_10 = arith.constant 0 : index
    %18 = vector.load %arg1[%c0_8, %c0_9, %c0_10] : memref<1x4x1xf32, #tpu.memory_space<vmem>>, vector<1x4x1xf32>
    %cst_11 = arith.constant 9.99999974E-6 : f32
    %19 = vector.broadcast %cst_11 : f32 to vector<1x4x1xf32>
    %20 = arith.addf %17, %19 : vector<1x4x1xf32>
    %21 = math.rsqrt %20 : vector<1x4x1xf32>
    %22 = arith.mulf %18, %21 : vector<1x4x1xf32>
    %c0_12 = arith.constant 0 : index
    %c0_13 = arith.constant 0 : index
    %c0_14 = arith.constant 0 : index
    %23 = vector.load %arg2[%c0_12, %c0_13, %c0_14] : memref<1x4x1xf32, #tpu.memory_space<vmem>>, vector<1x4x1xf32>
    %24 = arith.mulf %11, %22 : vector<1x4x1xf32>
    %25 = arith.subf %23, %24 : vector<1x4x1xf32>
    %26 = vector.broadcast %22 : vector<1x4x1xf32> to vector<8x4x64xf32>
    %27 = arith.mulf %0, %26 : vector<8x4x64xf32>
    %28 = vector.broadcast %25 : vector<1x4x1xf32> to vector<8x4x64xf32>
    %29 = arith.addf %27, %28 : vector<8x4x64xf32>
    %c0_15 = arith.constant 0 : index
    %c0_16 = arith.constant 0 : index
    %c0_17 = arith.constant 0 : index
    %30 = vector.load %arg3[%c0_15, %c0_16, %c0_17] : memref<8x4x64xf32, #tpu.memory_space<vmem>>, vector<8x4x64xf32>
    tpu.vector_store %arg3[%c0_15, %c0_16, %c0_17], %29 {strides = array<i32>} : memref<8x4x64xf32, #tpu.memory_space<vmem>>, vector<8x4x64xf32>,
    return
  }
}

</mosaic_0001>

<llo_original>
// kernel: tpu_custom_call.1
$region0: #{tpu_custom_call.1}
  #allocation0 [shape = 'u32[]', space=smem, size = 0x4, offset = 0x4, fixed_abs, tag = 'smem constant byte address 0x4 - core index']
  #allocation1 [shape = 'u32[144,128]{1,0:T(1,128)}', space=vmem, size = 0x12000, scoped, tag = 'internal scratch']
  %s0 = inlined_call_operand.hbm [shape: f32[8,4,64], index: 0, kind: input, shape index: {}]
  %s1 = inlined_call_operand.vmem [shape: f32[1,4,1], index: 1, kind: input, shape index: {}]
  %s2 = inlined_call_operand.vmem [shape: f32[1,4,1], index: 2, kind: input, shape index: {}]
  %s3 = inlined_call_operand.hbm [shape: f32[8,4,64], index: 3, kind: output, shape index: {}]
  %s4 = sld [smem:[#allocation0]]
  $region26: #{tpu_custom_call.1} parent=0
    _
  %s6 = ssub.s32 1, %s4
  %s7 = scalar_select 0, %s6, %s4
  $region1: #{tpu_custom_call.1} parent=0
    #allocation2 [shape = 'u8[16384]{0}', space=vmem, size = 0x4000, scoped, tag = 'input window, operand 0, single buffered']
    #allocation3 [shape = 's32[1]{0}', space=sflag, size = 0x4, scoped, tag = 'scoped memory for tpu_custom_call.1']
    #allocation4 [shape = 's32[1]{0}', space=sflag, size = 0x4, scoped, tag = 'scoped memory for tpu_custom_call.1']
    #allocation5 [shape = 'u8[16384]{0}', space=vmem, size = 0x4000, scoped, tag = 'output window, operand 0, single buffered']
    %8 = vsyncpa [#allocation3], 0
    %9 = vsyncpa [#allocation4], 0
    // Predicated region
    $region2: #{tpu_custom_call.1} parent=1 // pred_check
      _
    $region3: #{tpu_custom_call.1} parent=1 // pred_check_branch
      %11 = sbr.rel (0) target = $region5
    $region4: #{tpu_custom_call.1} parent=1 // pred_region
      %s13 = ssub.s32 512, 512
      %14 = vsyncadd [#allocation3], %s13
      %s15 = sshll.u32 [#allocation2], 4
      %s16 = int_to_ptr.vmem [resolvable:$true] %s15
      %21 = dma.hbm_to_vmem [thread:$0]  %s0, 512, %s16, [#allocation3], 64, 64, 4
    $region5: #{tpu_custom_call.1} parent=1 // pred_fallthru
      _
    // Predicated region
    $region6: #{tpu_custom_call.1} parent=1 // pred_check
      _
    $region7: #{tpu_custom_call.1} parent=1 // pred_check_branch
      %23 = sbr.rel (0) target = $region9
    $region8: #{tpu_custom_call.1} parent=1 // pred_region
      _
    $region9: #{tpu_custom_call.1} parent=1 // pred_fallthru
      _
    // Predicated region
    $region10: #{tpu_custom_call.1} parent=1 // pred_check
      _
    $region11: #{tpu_custom_call.1} parent=1 // pred_check_branch
      %25 = sbr.rel (0) target = $region13
    $region12: #{tpu_custom_call.1} parent=1 // pred_region
      _
    $region13: #{tpu_custom_call.1} parent=1 // pred_fallthru
      _
    // Predicated region
    $region14: #{tpu_custom_call.1} parent=1 // pred_check
      _
    $region15: #{tpu_custom_call.1} parent=1 // pred_check_branch
      %27 = sbr.rel (0) target = $region17
    $region16: #{tpu_custom_call.1} parent=1 // pred_region
      %28 = dma.done [#allocation3], 512
    $region17: #{tpu_custom_call.1} parent=1 // pred_fallthru
      _
    %v29 = vld [vmem:[#allocation2] sm:$0xf]
    %v30 = vld [vmem:[#allocation2 + $0x4] sm:$0xf]
    %v31 = vld [vmem:[#allocation2 + $0x8] sm:$0xf]
    %v32 = vld [vmem:[#allocation2 + $0xc] sm:$0xf]
    %v33 = vld [vmem:[#allocation2 + $0x10] sm:$0xf]
    %v34 = vld [vmem:[#allocation2 + $0x14] sm:$0xf]
    %v35 = vld [vmem:[#allocation2 + $0x18] sm:$0xf]
    %v36 = vld [vmem:[#allocation2 + $0x1c] sm:$0xf]
    %vm37 = vcmask 519168
    %v38 = vsel %vm37, %v29, 0.0
    %v39 = vsel %vm37, %v30, 0.0
    %v40 = vadd.f32 %v38, %v39
    %v41 = vsel %vm37, %v31, 0.0
    %v42 = vadd.f32 %v40, %v41
    %v43 = vsel %vm37, %v32, 0.0
    %v44 = vadd.f32 %v42, %v43
    %v45 = vsel %vm37, %v33, 0.0
    %v46 = vadd.f32 %v44, %v45
    %v47 = vsel %vm37, %v34, 0.0
    %v48 = vadd.f32 %v46, %v47
    %v49 = vsel %vm37, %v35, 0.0
    %v50 = vadd.f32 %v48, %v49
    %v51 = vsel %vm37, %v36, 0.0
    %v52 = vadd.f32 %v50, %v51
    %v53 = vmul.f32 %v29, %v29
    %v54 = vmul.f32 %v30, %v30
    %v55 = vmul.f32 %v31, %v31
    %v56 = vmul.f32 %v32, %v32
    %v57 = vmul.f32 %v33, %v33
    %v58 = vmul.f32 %v34, %v34
    %v59 = vmul.f32 %v35, %v35
    %v60 = vmul.f32 %v36, %v36
    %v61 = vsel %vm37, %v53, 0.0
    %v62 = vsel %vm37, %v54, 0.0
    %v63 = vadd.f32 %v61, %v62
    %v64 = vsel %vm37, %v55, 0.0
    %v65 = vadd.f32 %v63, %v64
    %v66 = vsel %vm37, %v56, 0.0
    %v67 = vadd.f32 %v65, %v66
    %v68 = vsel %vm37, %v57, 0.0
    %v69 = vadd.f32 %v67, %v68
    %v70 = vsel %vm37, %v58, 0.0
    %v71 = vadd.f32 %v69, %v70
    %v72 = vsel %vm37, %v59, 0.0
    %v73 = vadd.f32 %v71, %v72
    %v74 = vsel %vm37, %v60, 0.0
    %v75 = vadd.f32 %v73, %v74
    %v76 = vsel %vm37, %v52, 0.0
    %77 = vadd.xlane.f32.xlu0 %v76
    %v78 = vpop.xlane.xlu0 %77
    %v79 = vsel %vm37, %v75, 0.0
    %80 = vadd.xlane.f32.xlu0 %v79
    %v81 = vpop.xlane.xlu0 %80
    %v82 = vmul.f32 %v78, 0.001953125
    %v83 = vmul.f32 %v81, 0.001953125
    %v84 = vmul.f32 %v82, %v82
    %v85 = vsub.f32 %v83, %v84
    %v86 = vmax.f32 %v85, 0.0
    %v87 = vld [vmem:[%s1] sm:$0xf]
    %v88 = vadd.f32 %v86, 1e-05
    %v89 = vrsqrt.pop %v88
    %v90 = vmul.f32 %v87, %v89
    %v91 = vld [vmem:[%s2] sm:$0xf]
    %v92 = vmul.f32 %v82, %v90
    %v93 = vsub.f32 %v91, %v92
    %95 = vset.pattern.permute.xlu0 0
    %96 = vperm.xlu0 %95, %v90
    %v97 = vpop.permute.xlu0 %96
    %v99 = vmul.f32 %v29, %v97
    %v100 = vmul.f32 %v30, %v97
    %v101 = vmul.f32 %v31, %v97
    %v102 = vmul.f32 %v32, %v97
    %v103 = vmul.f32 %v33, %v97
    %v104 = vmul.f32 %v34, %v97
    %v105 = vmul.f32 %v35, %v97
    %v106 = vmul.f32 %v36, %v97
    %108 = vset.pattern.permute.xlu0 0
    %109 = vperm.xlu0 %108, %v93
    %v110 = vpop.permute.xlu0 %109
    %v112 = vadd.f32 %v99, %v110
    %v113 = vadd.f32 %v100, %v110
    %v114 = vadd.f32 %v101, %v110
    %v115 = vadd.f32 %v102, %v110
    %v116 = vadd.f32 %v103, %v110
    %v117 = vadd.f32 %v104, %v110
    %v118 = vadd.f32 %v105, %v110
    %v119 = vadd.f32 %v106, %v110
    %120 = vst.msk [vmem:[#allocation5] sm:$0xf] %vm37, %v112
    %121 = vst.msk [vmem:[#allocation5 + $0x4] sm:$0xf] %vm37, %v113
    %122 = vst.msk [vmem:[#allocation5 + $0x8] sm:$0xf] %vm37, %v114
    %123 = vst.msk [vmem:[#allocation5 + $0xc] sm:$0xf] %vm37, %v115
    %124 = vst.msk [vmem:[#allocation5 + $0x10] sm:$0xf] %vm37, %v116
    %125 = vst.msk [vmem:[#allocation5 + $0x14] sm:$0xf] %vm37, %v117
    %126 = vst.msk [vmem:[#allocation5 + $0x18] sm:$0xf] %vm37, %v118
    %127 = vst.msk [vmem:[#allocation5 + $0x1c] sm:$0xf] %vm37, %v119
    // Predicated region
    $region18: #{tpu_custom_call.1} parent=1 // pred_check
      _
    $region19: #{tpu_custom_call.1} parent=1 // pred_check_branch
      %129 = sbr.rel (0) target = $region21
    $region20: #{tpu_custom_call.1} parent=1 // pred_region
      %s131 = ssub.s32 512, 512
      %132 = vsyncadd [#allocation4], %s131
      %s133 = sshll.u32 [#allocation5], 4
      %s134 = int_to_ptr.vmem [resolvable:$true] %s133
      %139 = dma.vmem_to_hbm [thread:$0]  %s134, 512, %s3, [#allocation4], 64, 64, 4
    $region21: #{tpu_custom_call.1} parent=1 // pred_fallthru
      _
    // Predicated region
    $region22: #{tpu_custom_call.1} parent=1 // pred_check
      _
    $region23: #{tpu_custom_call.1} parent=1 // pred_check_branch
      %141 = sbr.rel (0) target = $region25
    $region24: #{tpu_custom_call.1} parent=1 // pred_region
      %142 = dma.done [#allocation4], 512
    $region25: #{tpu_custom_call.1} parent=1 // pred_fallthru
      _
    %143 = vsyncpa [#allocation3], 1
    %144 = vsyncpa [#allocation4], 1

</llo_original>
